<compile_context>
chip_gen: v5e
topology: v5e:2x2
jax: 0.10.0
libtpu: 0.0.40
codegen_flags: <defaults>
</compile_context>

<pallas_src>
import functools

import jax
import jax.numpy as jnp
from jax.experimental import pallas as pl
from jax.experimental.pallas import tpu as pltpu


LN_EPS = 1e-5  # PyTorch nn.LayerNorm default


def dynamic_pos_bias_kernel(
    biases_ref,   # (2, Npad)        f32, transposed biases
    vecs_ref,     # (C, 10)          f32, packed bias/gamma/beta column vectors
    mats_ref,     # (3P+H, P)        f32, row-stacked weights in (out, in) layout
    out_ref,      # (H, Npad)        f32
    *,
    pos_dim: int,
    num_heads: int,
    residual: bool,
):
    P, H = pos_dim, num_heads
    x = biases_ref[...].astype(jnp.float32)                      # (2, Npad)

    # --- unpack packed parameters (all static slices) -----------------------
    bp  = vecs_ref[0:P, 0:1]
    g1  = vecs_ref[0:P, 1:2]; be1 = vecs_ref[0:P, 2:3]; b1 = vecs_ref[0:P, 3:4]
    g2  = vecs_ref[0:P, 4:5]; be2 = vecs_ref[0:P, 5:6]; b2 = vecs_ref[0:P, 6:7]
    g3  = vecs_ref[0:P, 7:8]; be3 = vecs_ref[0:P, 8:9]
    b3  = vecs_ref[0:H, 9:10]

    wp = mats_ref[0:P, 0:2]                                      # (P, 2)
    w1 = mats_ref[P:2 * P, 0:P]                                  # (P, P)
    w2 = mats_ref[2 * P:3 * P, 0:P]                              # (P, P)
    w3 = mats_ref[3 * P:3 * P + H, 0:P]                          # (H, P)

    def linear(w, h, b_col):
        # w: (out, in) tiny; h: (in, Npad); b_col: (out, 1).
        # K is 2 or pos_dim -> far too small for the MXU; unrolled VPU FMAs.
        in_dim = w.shape[1]
        acc = w[:, 0:1] * h[0:1, :] + b_col                      # (out, Npad)
        for i in range(1, in_dim):
            acc = acc + w[:, i:i + 1] * h[i:i + 1, :]
        return acc

    def ln_relu_linear(h, g, be, w, b_col):
        # LayerNorm over the feature axis (now axis 0 / sublanes), then ReLU, Linear.
        mu = jnp.mean(h, axis=0, keepdims=True)                  # (1, Npad)
        var = jnp.mean((h - mu) * (h - mu), axis=0, keepdims=True)
        z = (h - mu) * jax.lax.rsqrt(var + LN_EPS)
        z = z * g + be
        z = jnp.maximum(z, 0.0)
        return linear(w, z, b_col)

    pos = linear(wp, x, bp)                                      # (P, Npad)

    if residual:
        pos = pos + ln_relu_linear(pos, g1, be1, w1, b1)
        pos = pos + ln_relu_linear(pos, g2, be2, w2, b2)
        pos = ln_relu_linear(pos, g3, be3, w3, b3)
    else:
        pos = ln_relu_linear(pos, g1, be1, w1, b1)
        pos = ln_relu_linear(pos, g2, be2, w2, b2)
        pos = ln_relu_linear(pos, g3, be3, w3, b3)

    out_ref[...] = pos.astype(out_ref.dtype)                     # (H, Npad), lane-dense


def dynamic_pos_bias(biases, params, *, residual: bool):
    """Apply DynamicPosBias to `biases` of shape (N, 2). Returns (N, num_heads)."""
    N = biases.shape[0]
    P = params["wp"].shape[0]        # pos_dim   (PyTorch weight layout: (out, in))
    H = params["w3"].shape[0]        # num_heads
    C = max(P, H)

    # Pad N (lane axis) to a multiple of 128 so every store is unmasked/lane-dense.
    n_pad = pl.cdiv(N, 128) * 128
    biases_t = jnp.zeros((2, n_pad), jnp.float32).at[:, :N].set(
        biases.astype(jnp.float32).T)

    # Pack the 10 per-feature vectors into one (C, 10) array (column j = vector j).
    def col(v, rows):
        return jnp.zeros((C,), jnp.float32).at[:rows].set(v.astype(jnp.float32))

    vecs = jnp.stack(
        [
            col(params["bp"], P),
            col(params["g1"], P), col(params["be1"], P), col(params["b1"], P),
            col(params["g2"], P), col(params["be2"], P), col(params["b2"], P),
            col(params["g3"], P), col(params["be3"], P),
            col(params["b3"], H),
        ],
        axis=1,
    )                                                            # (C, 10)

    # Pack the 4 weight matrices row-wise into one (3P+H, P) array.
    wp_pad = jnp.zeros((P, P), jnp.float32).at[:, :2].set(params["wp"])
    mats = jnp.concatenate(
        [wp_pad, params["w1"], params["w2"], params["w3"]], axis=0)  # (3P+H, P)

    out_t = pl.pallas_call(
        functools.partial(
            dynamic_pos_bias_kernel, pos_dim=P, num_heads=H, residual=residual),
        out_shape=jax.ShapeDtypeStruct((H, n_pad), jnp.float32),
        grid_spec=pltpu.PrefetchScalarGridSpec(
            num_scalar_prefetch=0,
            grid=(1,),                                  # single step: everything fits in VMEM
            in_specs=[
                pl.BlockSpec((2, n_pad), lambda i: (0, 0)),
                pl.BlockSpec((C, 10), lambda i: (0, 0)),
                pl.BlockSpec((3 * P + H, P), lambda i: (0, 0)),
            ],
            out_specs=pl.BlockSpec((H, n_pad), lambda i: (0, 0)),
        ),
        compiler_params=pltpu.CompilerParams(
            dimension_semantics=("arbitrary",),
        ),
    )(biases_t, vecs, mats)

    return out_t[:, :N].T                                        # (N, H)


def init_params(key, dim, num_heads):
    """Deterministic synthetic parameters matching DynamicPosBias.__init__ shapes.

    Weights are stored in PyTorch nn.Linear layout: (out_features, in_features).
    Vectors (biases, LayerNorm gamma/beta) are 1-D (features,).
    """
    pos_dim = dim // 4
    ks = jax.random.split(key, 4)

    def lin(k, fan_in, fan_out):
        bound = 1.0 / (fan_in ** 0.5)
        kw, kb = jax.random.split(k)
        w = jax.random.uniform(kw, (fan_out, fan_in), jnp.float32, -bound, bound)
        b = jax.random.uniform(kb, (fan_out,), jnp.float32, -bound, bound)
        return w, b

    wp, bp = lin(ks[0], 2, pos_dim)
    w1, b1 = lin(ks[1], pos_dim, pos_dim)
    w2, b2 = lin(ks[2], pos_dim, pos_dim)
    w3, b3 = lin(ks[3], pos_dim, num_heads)

    ones = lambda f: jnp.ones((f,), jnp.float32)
    zeros = lambda f: jnp.zeros((f,), jnp.float32)

    return {
        "wp": wp, "bp": bp,
        "g1": ones(pos_dim), "be1": zeros(pos_dim), "w1": w1, "b1": b1,
        "g2": ones(pos_dim), "be2": zeros(pos_dim), "w2": w2, "b2": b2,
        "g3": ones(pos_dim), "be3": zeros(pos_dim), "w3": w3, "b3": b3,
    }


def reference(biases, p, residual):
    """Pure-JAX reference mirroring the PyTorch forward (row-major, (N, F))."""
    def blk(x, g, be, w, b):
        mu = jnp.mean(x, -1, keepdims=True)
        var = jnp.mean((x - mu) ** 2, -1, keepdims=True)
        h = (x - mu) / jnp.sqrt(var + LN_EPS) * g + be
        h = jnp.maximum(h, 0.0)
        return h @ w.T + b

    pos = biases @ p["wp"].T + p["bp"]
    if residual:
        pos = pos + blk(pos, p["g1"], p["be1"], p["w1"], p["b1"])
        pos = pos + blk(pos, p["g2"], p["be2"], p["w2"], p["b2"])
        pos = blk(pos, p["g3"], p["be3"], p["w3"], p["b3"])
    else:
        pos = blk(pos, p["g1"], p["be1"], p["w1"], p["b1"])
        pos = blk(pos, p["g2"], p["be2"], p["w2"], p["b2"])
        pos = blk(pos, p["g3"], p["be3"], p["w3"], p["b3"])
    return pos


if __name__ == "__main__":
    key = jax.random.PRNGKey(0)

    dim, num_heads = 32, 4          # pos_dim = dim // 4 = 8
    group_size = 8                  # CrossFormer-style relative coords

    # biases: relative (dy, dx) coordinate table, shape ((2G-1)^2, 2) = (225, 2)
    coords = jnp.arange(1 - group_size, group_size, dtype=jnp.float32)
    dy, dx = jnp.meshgrid(coords, coords, indexing="ij")
    biases = jnp.stack([dy.reshape(-1), dx.reshape(-1)], axis=-1)

    params = init_params(key, dim, num_heads)

    for residual in (True, False):
        out = jax.block_until_ready(dynamic_pos_bias(biases, params, residual=residual))
        ref = reference(biases, params, residual)
        assert out.shape == (biases.shape[0], num_heads)
        assert jnp.allclose(out, ref, atol=1e-4, rtol=1e-4), (
            f"mismatch (residual={residual})"
        )

    print("KERNEL_OK")
</pallas_src>

<mosaic_0001>
module attributes {stable_mosaic.version = 11 : i64} {
  func.func @dynamic_pos_bias_kernel(%arg0: i32, %arg1: memref<2x256xf32, #tpu.memory_space<vmem>>, %arg2: memref<8x10xf32, #tpu.memory_space<vmem>>, %arg3: memref<28x8xf32, #tpu.memory_space<vmem>>, %arg4: memref<4x256xf32, #tpu.memory_space<vmem>>) attributes {dimension_semantics = [#tpu.dimension_semantics<arbitrary>], iteration_bounds = array<i64: 1>, scalar_prefetch = 0 : i64, scratch_operands = 0 : i64, tpu.core_type = #tpu.core_type<tc>, window_params = [{pipeline_mode = #tpu.pipeline_mode<synchronous>, transform_indices = @transform_0, window_bounds = array<i64: 2, 256>}, {pipeline_mode = #tpu.pipeline_mode<synchronous>, transform_indices = @transform_1, window_bounds = array<i64: 8, 10>}, {pipeline_mode = #tpu.pipeline_mode<synchronous>, transform_indices = @transform_2, window_bounds = array<i64: 28, 8>}, {pipeline_mode = #tpu.pipeline_mode<synchronous>, transform_indices = @transform_3, window_bounds = array<i64: 4, 256>}]} {
    %c0 = arith.constant 0 : index
    %c0_0 = arith.constant 0 : index
    %0 = vector.load %arg1[%c0, %c0_0] : memref<2x256xf32, #tpu.memory_space<vmem>>, vector<2x256xf32>
    %c0_1 = arith.constant 0 : index
    %c0_2 = arith.constant 0 : index
    %1 = vector.load %arg2[%c0_1, %c0_2] : memref<8x10xf32, #tpu.memory_space<vmem>>, vector<8x1xf32>
    %c0_3 = arith.constant 0 : index
    %c1 = arith.constant 1 : index
    %2 = vector.load %arg2[%c0_3, %c1] : memref<8x10xf32, #tpu.memory_space<vmem>>, vector<8x1xf32>
    %c0_4 = arith.constant 0 : index
    %c2 = arith.constant 2 : index
    %3 = vector.load %arg2[%c0_4, %c2] : memref<8x10xf32, #tpu.memory_space<vmem>>, vector<8x1xf32>
    %c0_5 = arith.constant 0 : index
    %c3 = arith.constant 3 : index
    %4 = vector.load %arg2[%c0_5, %c3] : memref<8x10xf32, #tpu.memory_space<vmem>>, vector<8x1xf32>
    %c0_6 = arith.constant 0 : index
    %c4 = arith.constant 4 : index
    %5 = vector.load %arg2[%c0_6, %c4] : memref<8x10xf32, #tpu.memory_space<vmem>>, vector<8x1xf32>
    %c0_7 = arith.constant 0 : index
    %c5 = arith.constant 5 : index
    %6 = vector.load %arg2[%c0_7, %c5] : memref<8x10xf32, #tpu.memory_space<vmem>>, vector<8x1xf32>
    %c0_8 = arith.constant 0 : index
    %c6 = arith.constant 6 : index
    %7 = vector.load %arg2[%c0_8, %c6] : memref<8x10xf32, #tpu.memory_space<vmem>>, vector<8x1xf32>
    %c0_9 = arith.constant 0 : index
    %c7 = arith.constant 7 : index
    %8 = vector.load %arg2[%c0_9, %c7] : memref<8x10xf32, #tpu.memory_space<vmem>>, vector<8x1xf32>
    %c0_10 = arith.constant 0 : index
    %c8 = arith.constant 8 : index
    %9 = vector.load %arg2[%c0_10, %c8] : memref<8x10xf32, #tpu.memory_space<vmem>>, vector<8x1xf32>
    %c0_11 = arith.constant 0 : index
    %c9 = arith.constant 9 : index
    %10 = vector.load %arg2[%c0_11, %c9] : memref<8x10xf32, #tpu.memory_space<vmem>>, vector<4x1xf32>
    %c0_12 = arith.constant 0 : index
    %c0_13 = arith.constant 0 : index
    %11 = vector.load %arg3[%c0_12, %c0_13] : memref<28x8xf32, #tpu.memory_space<vmem>>, vector<8x2xf32>
    %c8_14 = arith.constant 8 : index
    %c0_15 = arith.constant 0 : index
    %12 = vector.load %arg3[%c8_14, %c0_15] : memref<28x8xf32, #tpu.memory_space<vmem>>, vector<8x8xf32>
    %c16 = arith.constant 16 : index
    %c0_16 = arith.constant 0 : index
    %13 = vector.load %arg3[%c16, %c0_16] : memref<28x8xf32, #tpu.memory_space<vmem>>, vector<8x8xf32>
    %c24 = arith.constant 24 : index
    %c0_17 = arith.constant 0 : index
    %14 = vector.load %arg3[%c24, %c0_17] : memref<28x8xf32, #tpu.memory_space<vmem>>, vector<4x8xf32>
    %15 = vector.extract_strided_slice %11 {offsets = [0, 0], sizes = [8, 1], strides = [1, 1]} : vector<8x2xf32> to vector<8x1xf32>
    %16 = vector.extract_strided_slice %0 {offsets = [0, 0], sizes = [1, 256], strides = [1, 1]} : vector<2x256xf32> to vector<1x256xf32>
    %17 = vector.broadcast %15 : vector<8x1xf32> to vector<8x256xf32>
    %18 = vector.broadcast %16 : vector<1x256xf32> to vector<8x256xf32>
    %19 = arith.mulf %17, %18 : vector<8x256xf32>
    %20 = vector.broadcast %1 : vector<8x1xf32> to vector<8x256xf32>
    %21 = arith.addf %19, %20 : vector<8x256xf32>
    %22 = vector.extract_strided_slice %11 {offsets = [0, 1], sizes = [8, 1], strides = [1, 1]} : vector<8x2xf32> to vector<8x1xf32>
    %23 = vector.extract_strided_slice %0 {offsets = [1, 0], sizes = [1, 256], strides = [1, 1]} : vector<2x256xf32> to vector<1x256xf32>
    %24 = vector.broadcast %22 : vector<8x1xf32> to vector<8x256xf32>
    %25 = vector.broadcast %23 : vector<1x256xf32> to vector<8x256xf32>
    %26 = arith.mulf %24, %25 : vector<8x256xf32>
    %27 = arith.addf %21, %26 : vector<8x256xf32>
    %cst = arith.constant dense<0.000000e+00> : vector<256xf32>
    %28 = vector.multi_reduction <add>, %27, %cst [0] : vector<8x256xf32> to vector<256xf32>
    %29 = vector.shape_cast %28 : vector<256xf32> to vector<1x256xf32>
    %cst_18 = arith.constant 8.000000e+00 : f32
    %30 = vector.broadcast %cst_18 : f32 to vector<1x256xf32>
    %31 = arith.divf %29, %30 : vector<1x256xf32>
    %32 = vector.broadcast %31 : vector<1x256xf32> to vector<8x256xf32>
    %33 = arith.subf %27, %32 : vector<8x256xf32>
    %34 = vector.broadcast %31 : vector<1x256xf32> to vector<8x256xf32>
    %35 = arith.subf %27, %34 : vector<8x256xf32>
    %36 = arith.mulf %33, %35 : vector<8x256xf32>
    %cst_19 = arith.constant dense<0.000000e+00> : vector<256xf32>
    %37 = vector.multi_reduction <add>, %36, %cst_19 [0] : vector<8x256xf32> to vector<256xf32>
    %38 = vector.shape_cast %37 : vector<256xf32> to vector<1x256xf32>
    %cst_20 = arith.constant 8.000000e+00 : f32
    %39 = vector.broadcast %cst_20 : f32 to vector<1x256xf32>
    %40 = arith.divf %38, %39 : vector<1x256xf32>
    %41 = vector.broadcast %31 : vector<1x256xf32> to vector<8x256xf32>
    %42 = arith.subf %27, %41 : vector<8x256xf32>
    %cst_21 = arith.constant 9.99999974E-6 : f32
    %43 = vector.broadcast %cst_21 : f32 to vector<1x256xf32>
    %44 = arith.addf %40, %43 : vector<1x256xf32>
    %45 = math.rsqrt %44 : vector<1x256xf32>
    %46 = vector.broadcast %45 : vector<1x256xf32> to vector<8x256xf32>
    %47 = arith.mulf %42, %46 : vector<8x256xf32>
    %48 = vector.broadcast %2 : vector<8x1xf32> to vector<8x256xf32>
    %49 = arith.mulf %47, %48 : vector<8x256xf32>
    %50 = vector.broadcast %3 : vector<8x1xf32> to vector<8x256xf32>
    %51 = arith.addf %49, %50 : vector<8x256xf32>
    %cst_22 = arith.constant 0.000000e+00 : f32
    %52 = vector.broadcast %cst_22 : f32 to vector<8x256xf32>
    %53 = arith.maximumf %51, %52 : vector<8x256xf32>
    %54 = vector.extract_strided_slice %12 {offsets = [0, 0], sizes = [8, 1], strides = [1, 1]} : vector<8x8xf32> to vector<8x1xf32>
    %55 = vector.extract_strided_slice %53 {offsets = [0, 0], sizes = [1, 256], strides = [1, 1]} : vector<8x256xf32> to vector<1x256xf32>
    %56 = vector.broadcast %54 : vector<8x1xf32> to vector<8x256xf32>
    %57 = vector.broadcast %55 : vector<1x256xf32> to vector<8x256xf32>
    %58 = arith.mulf %56, %57 : vector<8x256xf32>
    %59 = vector.broadcast %4 : vector<8x1xf32> to vector<8x256xf32>
    %60 = arith.addf %58, %59 : vector<8x256xf32>
    %61 = vector.extract_strided_slice %12 {offsets = [0, 1], sizes = [8, 1], strides = [1, 1]} : vector<8x8xf32> to vector<8x1xf32>
    %62 = vector.extract_strided_slice %53 {offsets = [1, 0], sizes = [1, 256], strides = [1, 1]} : vector<8x256xf32> to vector<1x256xf32>
    %63 = vector.broadcast %61 : vector<8x1xf32> to vector<8x256xf32>
    %64 = vector.broadcast %62 : vector<1x256xf32> to vector<8x256xf32>
    %65 = arith.mulf %63, %64 : vector<8x256xf32>
    %66 = arith.addf %60, %65 : vector<8x256xf32>
    %67 = vector.extract_strided_slice %12 {offsets = [0, 2], sizes = [8, 1], strides = [1, 1]} : vector<8x8xf32> to vector<8x1xf32>
    %68 = vector.extract_strided_slice %53 {offsets = [2, 0], sizes = [1, 256], strides = [1, 1]} : vector<8x256xf32> to vector<1x256xf32>
    %69 = vector.broadcast %67 : vector<8x1xf32> to vector<8x256xf32>
    %70 = vector.broadcast %68 : vector<1x256xf32> to vector<8x256xf32>
    %71 = arith.mulf %69, %70 : vector<8x256xf32>
    %72 = arith.addf %66, %71 : vector<8x256xf32>
    %73 = vector.extract_strided_slice %12 {offsets = [0, 3], sizes = [8, 1], strides = [1, 1]} : vector<8x8xf32> to vector<8x1xf32>
    %74 = vector.extract_strided_slice %53 {offsets = [3, 0], sizes = [1, 256], strides = [1, 1]} : vector<8x256xf32> to vector<1x256xf32>
    %75 = vector.broadcast %73 : vector<8x1xf32> to vector<8x256xf32>
    %76 = vector.broadcast %74 : vector<1x256xf32> to vector<8x256xf32>
    %77 = arith.mulf %75, %76 : vector<8x256xf32>
    %78 = arith.addf %72, %77 : vector<8x256xf32>
    %79 = vector.extract_strided_slice %12 {offsets = [0, 4], sizes = [8, 1], strides = [1, 1]} : vector<8x8xf32> to vector<8x1xf32>
    %80 = vector.extract_strided_slice %53 {offsets = [4, 0], sizes = [1, 256], strides = [1, 1]} : vector<8x256xf32> to vector<1x256xf32>
    %81 = vector.broadcast %79 : vector<8x1xf32> to vector<8x256xf32>
    %82 = vector.broadcast %80 : vector<1x256xf32> to vector<8x256xf32>
    %83 = arith.mulf %81, %82 : vector<8x256xf32>
    %84 = arith.addf %78, %83 : vector<8x256xf32>
    %85 = vector.extract_strided_slice %12 {offsets = [0, 5], sizes = [8, 1], strides = [1, 1]} : vector<8x8xf32> to vector<8x1xf32>
    %86 = vector.extract_strided_slice %53 {offsets = [5, 0], sizes = [1, 256], strides = [1, 1]} : vector<8x256xf32> to vector<1x256xf32>
    %87 = vector.broadcast %85 : vector<8x1xf32> to vector<8x256xf32>
    %88 = vector.broadcast %86 : vector<1x256xf32> to vector<8x256xf32>
    %89 = arith.mulf %87, %88 : vector<8x256xf32>
    %90 = arith.addf %84, %89 : vector<8x256xf32>
    %91 = vector.extract_strided_slice %12 {offsets = [0, 6], sizes = [8, 1], strides = [1, 1]} : vector<8x8xf32> to vector<8x1xf32>
    %92 = vector.extract_strided_slice %53 {offsets = [6, 0], sizes = [1, 256], strides = [1, 1]} : vector<8x256xf32> to vector<1x256xf32>
    %93 = vector.broadcast %91 : vector<8x1xf32> to vector<8x256xf32>
    %94 = vector.broadcast %92 : vector<1x256xf32> to vector<8x256xf32>
    %95 = arith.mulf %93, %94 : vector<8x256xf32>
    %96 = arith.addf %90, %95 : vector<8x256xf32>
    %97 = vector.extract_strided_slice %12 {offsets = [0, 7], sizes = [8, 1], strides = [1, 1]} : vector<8x8xf32> to vector<8x1xf32>
    %98 = vector.extract_strided_slice %53 {offsets = [7, 0], sizes = [1, 256], strides = [1, 1]} : vector<8x256xf32> to vector<1x256xf32>
    %99 = vector.broadcast %97 : vector<8x1xf32> to vector<8x256xf32>
    %100 = vector.broadcast %98 : vector<1x256xf32> to vector<8x256xf32>
    %101 = arith.mulf %99, %100 : vector<8x256xf32>
    %102 = arith.addf %96, %101 : vector<8x256xf32>
    %103 = arith.addf %27, %102 : vector<8x256xf32>
    %cst_23 = arith.constant dense<0.000000e+00> : vector<256xf32>
    %104 = vector.multi_reduction <add>, %103, %cst_23 [0] : vector<8x256xf32> to vector<256xf32>
    %105 = vector.shape_cast %104 : vector<256xf32> to vector<1x256xf32>
    %cst_24 = arith.constant 8.000000e+00 : f32
    %106 = vector.broadcast %cst_24 : f32 to vector<1x256xf32>
    %107 = arith.divf %105, %106 : vector<1x256xf32>
    %108 = vector.broadcast %107 : vector<1x256xf32> to vector<8x256xf32>
    %109 = arith.subf %103, %108 : vector<8x256xf32>
    %110 = vector.broadcast %107 : vector<1x256xf32> to vector<8x256xf32>
    %111 = arith.subf %103, %110 : vector<8x256xf32>
    %112 = arith.mulf %109, %111 : vector<8x256xf32>
    %cst_25 = arith.constant dense<0.000000e+00> : vector<256xf32>
    %113 = vector.multi_reduction <add>, %112, %cst_25 [0] : vector<8x256xf32> to vector<256xf32>
    %114 = vector.shape_cast %113 : vector<256xf32> to vector<1x256xf32>
    %cst_26 = arith.constant 8.000000e+00 : f32
    %115 = vector.broadcast %cst_26 : f32 to vector<1x256xf32>
    %116 = arith.divf %114, %115 : vector<1x256xf32>
    %117 = vector.broadcast %107 : vector<1x256xf32> to vector<8x256xf32>
    %118 = arith.subf %103, %117 : vector<8x256xf32>
    %cst_27 = arith.constant 9.99999974E-6 : f32
    %119 = vector.broadcast %cst_27 : f32 to vector<1x256xf32>
    %120 = arith.addf %116, %119 : vector<1x256xf32>
    %121 = math.rsqrt %120 : vector<1x256xf32>
    %122 = vector.broadcast %121 : vector<1x256xf32> to vector<8x256xf32>
    %123 = arith.mulf %118, %122 : vector<8x256xf32>
    %124 = vector.broadcast %5 : vector<8x1xf32> to vector<8x256xf32>
    %125 = arith.mulf %123, %124 : vector<8x256xf32>
    %126 = vector.broadcast %6 : vector<8x1xf32> to vector<8x256xf32>
    %127 = arith.addf %125, %126 : vector<8x256xf32>
    %cst_28 = arith.constant 0.000000e+00 : f32
    %128 = vector.broadcast %cst_28 : f32 to vector<8x256xf32>
    %129 = arith.maximumf %127, %128 : vector<8x256xf32>
    %130 = vector.extract_strided_slice %13 {offsets = [0, 0], sizes = [8, 1], strides = [1, 1]} : vector<8x8xf32> to vector<8x1xf32>
    %131 = vector.extract_strided_slice %129 {offsets = [0, 0], sizes = [1, 256], strides = [1, 1]} : vector<8x256xf32> to vector<1x256xf32>
    %132 = vector.broadcast %130 : vector<8x1xf32> to vector<8x256xf32>
    %133 = vector.broadcast %131 : vector<1x256xf32> to vector<8x256xf32>
    %134 = arith.mulf %132, %133 : vector<8x256xf32>
    %135 = vector.broadcast %7 : vector<8x1xf32> to vector<8x256xf32>
    %136 = arith.addf %134, %135 : vector<8x256xf32>
    %137 = vector.extract_strided_slice %13 {offsets = [0, 1], sizes = [8, 1], strides = [1, 1]} : vector<8x8xf32> to vector<8x1xf32>
    %138 = vector.extract_strided_slice %129 {offsets = [1, 0], sizes = [1, 256], strides = [1, 1]} : vector<8x256xf32> to vector<1x256xf32>
    %139 = vector.broadcast %137 : vector<8x1xf32> to vector<8x256xf32>
    %140 = vector.broadcast %138 : vector<1x256xf32> to vector<8x256xf32>
    %141 = arith.mulf %139, %140 : vector<8x256xf32>
    %142 = arith.addf %136, %141 : vector<8x256xf32>
    %143 = vector.extract_strided_slice %13 {offsets = [0, 2], sizes = [8, 1], strides = [1, 1]} : vector<8x8xf32> to vector<8x1xf32>
    %144 = vector.extract_strided_slice %129 {offsets = [2, 0], sizes = [1, 256], strides = [1, 1]} : vector<8x256xf32> to vector<1x256xf32>
    %145 = vector.broadcast %143 : vector<8x1xf32> to vector<8x256xf32>
    %146 = vector.broadcast %144 : vector<1x256xf32> to vector<8x256xf32>
    %147 = arith.mulf %145, %146 : vector<8x256xf32>
    %148 = arith.addf %142, %147 : vector<8x256xf32>
    %149 = vector.extract_strided_slice %13 {offsets = [0, 3], sizes = [8, 1], strides = [1, 1]} : vector<8x8xf32> to vector<8x1xf32>
    %150 = vector.extract_strided_slice %129 {offsets = [3, 0], sizes = [1, 256], strides = [1, 1]} : vector<8x256xf32> to vector<1x256xf32>
    %151 = vector.broadcast %149 : vector<8x1xf32> to vector<8x256xf32>
    %152 = vector.broadcast %150 : vector<1x256xf32> to vector<8x256xf32>
    %153 = arith.mulf %151, %152 : vector<8x256xf32>
    %154 = arith.addf %148, %153 : vector<8x256xf32>
    %155 = vector.extract_strided_slice %13 {offsets = [0, 4], sizes = [8, 1], strides = [1, 1]} : vector<8x8xf32> to vector<8x1xf32>
    %156 = vector.extract_strided_slice %129 {offsets = [4, 0], sizes = [1, 256], strides = [1, 1]} : vector<8x256xf32> to vector<1x256xf32>
    %157 = vector.broadcast %155 : vector<8x1xf32> to vector<8x256xf32>
    %158 = vector.broadcast %156 : vector<1x256xf32> to vector<8x256xf32>
    %159 = arith.mulf %157, %158 : vector<8x256xf32>
    %160 = arith.addf %154, %159 : vector<8x256xf32>
    %161 = vector.extract_strided_slice %13 {offsets = [0, 5], sizes = [8, 1], strides = [1, 1]} : vector<8x8xf32> to vector<8x1xf32>
    %162 = vector.extract_strided_slice %129 {offsets = [5, 0], sizes = [1, 256], strides = [1, 1]} : vector<8x256xf32> to vector<1x256xf32>
    %163 = vector.broadcast %161 : vector<8x1xf32> to vector<8x256xf32>
    %164 = vector.broadcast %162 : vector<1x256xf32> to vector<8x256xf32>
    %165 = arith.mulf %163, %164 : vector<8x256xf32>
    %166 = arith.addf %160, %165 : vector<8x256xf32>
    %167 = vector.extract_strided_slice %13 {offsets = [0, 6], sizes = [8, 1], strides = [1, 1]} : vector<8x8xf32> to vector<8x1xf32>
    %168 = vector.extract_strided_slice %129 {offsets = [6, 0], sizes = [1, 256], strides = [1, 1]} : vector<8x256xf32> to vector<1x256xf32>
    %169 = vector.broadcast %167 : vector<8x1xf32> to vector<8x256xf32>
    %170 = vector.broadcast %168 : vector<1x256xf32> to vector<8x256xf32>
    %171 = arith.mulf %169, %170 : vector<8x256xf32>
    %172 = arith.addf %166, %171 : vector<8x256xf32>
    %173 = vector.extract_strided_slice %13 {offsets = [0, 7], sizes = [8, 1], strides = [1, 1]} : vector<8x8xf32> to vector<8x1xf32>
    %174 = vector.extract_strided_slice %129 {offsets = [7, 0], sizes = [1, 256], strides = [1, 1]} : vector<8x256xf32> to vector<1x256xf32>
    %175 = vector.broadcast %173 : vector<8x1xf32> to vector<8x256xf32>
    %176 = vector.broadcast %174 : vector<1x256xf32> to vector<8x256xf32>
    %177 = arith.mulf %175, %176 : vector<8x256xf32>
    %178 = arith.addf %172, %177 : vector<8x256xf32>
    %179 = arith.addf %103, %178 : vector<8x256xf32>
    %cst_29 = arith.constant dense<0.000000e+00> : vector<256xf32>
    %180 = vector.multi_reduction <add>, %179, %cst_29 [0] : vector<8x256xf32> to vector<256xf32>
    %181 = vector.shape_cast %180 : vector<256xf32> to vector<1x256xf32>
    %cst_30 = arith.constant 8.000000e+00 : f32
    %182 = vector.broadcast %cst_30 : f32 to vector<1x256xf32>
    %183 = arith.divf %181, %182 : vector<1x256xf32>
    %184 = vector.broadcast %183 : vector<1x256xf32> to vector<8x256xf32>
    %185 = arith.subf %179, %184 : vector<8x256xf32>
    %186 = vector.broadcast %183 : vector<1x256xf32> to vector<8x256xf32>
    %187 = arith.subf %179, %186 : vector<8x256xf32>
    %188 = arith.mulf %185, %187 : vector<8x256xf32>
    %cst_31 = arith.constant dense<0.000000e+00> : vector<256xf32>
    %189 = vector.multi_reduction <add>, %188, %cst_31 [0] : vector<8x256xf32> to vector<256xf32>
    %190 = vector.shape_cast %189 : vector<256xf32> to vector<1x256xf32>
    %cst_32 = arith.constant 8.000000e+00 : f32
    %191 = vector.broadcast %cst_32 : f32 to vector<1x256xf32>
    %192 = arith.divf %190, %191 : vector<1x256xf32>
    %193 = vector.broadcast %183 : vector<1x256xf32> to vector<8x256xf32>
    %194 = arith.subf %179, %193 : vector<8x256xf32>
    %cst_33 = arith.constant 9.99999974E-6 : f32
    %195 = vector.broadcast %cst_33 : f32 to vector<1x256xf32>
    %196 = arith.addf %192, %195 : vector<1x256xf32>
    %197 = math.rsqrt %196 : vector<1x256xf32>
    %198 = vector.broadcast %197 : vector<1x256xf32> to vector<8x256xf32>
    %199 = arith.mulf %194, %198 : vector<8x256xf32>
    %200 = vector.broadcast %8 : vector<8x1xf32> to vector<8x256xf32>
    %201 = arith.mulf %199, %200 : vector<8x256xf32>
    %202 = vector.broadcast %9 : vector<8x1xf32> to vector<8x256xf32>
    %203 = arith.addf %201, %202 : vector<8x256xf32>
    %cst_34 = arith.constant 0.000000e+00 : f32
    %204 = vector.broadcast %cst_34 : f32 to vector<8x256xf32>
    %205 = arith.maximumf %203, %204 : vector<8x256xf32>
    %206 = vector.extract_strided_slice %14 {offsets = [0, 0], sizes = [4, 1], strides = [1, 1]} : vector<4x8xf32> to vector<4x1xf32>
    %207 = vector.extract_strided_slice %205 {offsets = [0, 0], sizes = [1, 256], strides = [1, 1]} : vector<8x256xf32> to vector<1x256xf32>
    %208 = vector.broadcast %206 : vector<4x1xf32> to vector<4x256xf32>
    %209 = vector.broadcast %207 : vector<1x256xf32> to vector<4x256xf32>
    %210 = arith.mulf %208, %209 : vector<4x256xf32>
    %211 = vector.broadcast %10 : vector<4x1xf32> to vector<4x256xf32>
    %212 = arith.addf %210, %211 : vector<4x256xf32>
    %213 = vector.extract_strided_slice %14 {offsets = [0, 1], sizes = [4, 1], strides = [1, 1]} : vector<4x8xf32> to vector<4x1xf32>
    %214 = vector.extract_strided_slice %205 {offsets = [1, 0], sizes = [1, 256], strides = [1, 1]} : vector<8x256xf32> to vector<1x256xf32>
    %215 = vector.broadcast %213 : vector<4x1xf32> to vector<4x256xf32>
    %216 = vector.broadcast %214 : vector<1x256xf32> to vector<4x256xf32>
    %217 = arith.mulf %215, %216 : vector<4x256xf32>
    %218 = arith.addf %212, %217 : vector<4x256xf32>
    %219 = vector.extract_strided_slice %14 {offsets = [0, 2], sizes = [4, 1], strides = [1, 1]} : vector<4x8xf32> to vector<4x1xf32>
    %220 = vector.extract_strided_slice %205 {offsets = [2, 0], sizes = [1, 256], strides = [1, 1]} : vector<8x256xf32> to vector<1x256xf32>
    %221 = vector.broadcast %219 : vector<4x1xf32> to vector<4x256xf32>
    %222 = vector.broadcast %220 : vector<1x256xf32> to vector<4x256xf32>
    %223 = arith.mulf %221, %222 : vector<4x256xf32>
    %224 = arith.addf %218, %223 : vector<4x256xf32>
    %225 = vector.extract_strided_slice %14 {offsets = [0, 3], sizes = [4, 1], strides = [1, 1]} : vector<4x8xf32> to vector<4x1xf32>
    %226 = vector.extract_strided_slice %205 {offsets = [3, 0], sizes = [1, 256], strides = [1, 1]} : vector<8x256xf32> to vector<1x256xf32>
    %227 = vector.broadcast %225 : vector<4x1xf32> to vector<4x256xf32>
    %228 = vector.broadcast %226 : vector<1x256xf32> to vector<4x256xf32>
    %229 = arith.mulf %227, %228 : vector<4x256xf32>
    %230 = arith.addf %224, %229 : vector<4x256xf32>
    %231 = vector.extract_strided_slice %14 {offsets = [0, 4], sizes = [4, 1], strides = [1, 1]} : vector<4x8xf32> to vector<4x1xf32>
    %232 = vector.extract_strided_slice %205 {offsets = [4, 0], sizes = [1, 256], strides = [1, 1]} : vector<8x256xf32> to vector<1x256xf32>
    %233 = vector.broadcast %231 : vector<4x1xf32> to vector<4x256xf32>
    %234 = vector.broadcast %232 : vector<1x256xf32> to vector<4x256xf32>
    %235 = arith.mulf %233, %234 : vector<4x256xf32>
    %236 = arith.addf %230, %235 : vector<4x256xf32>
    %237 = vector.extract_strided_slice %14 {offsets = [0, 5], sizes = [4, 1], strides = [1, 1]} : vector<4x8xf32> to vector<4x1xf32>
    %238 = vector.extract_strided_slice %205 {offsets = [5, 0], sizes = [1, 256], strides = [1, 1]} : vector<8x256xf32> to vector<1x256xf32>
    %239 = vector.broadcast %237 : vector<4x1xf32> to vector<4x256xf32>
    %240 = vector.broadcast %238 : vector<1x256xf32> to vector<4x256xf32>
    %241 = arith.mulf %239, %240 : vector<4x256xf32>
    %242 = arith.addf %236, %241 : vector<4x256xf32>
    %243 = vector.extract_strided_slice %14 {offsets = [0, 6], sizes = [4, 1], strides = [1, 1]} : vector<4x8xf32> to vector<4x1xf32>
    %244 = vector.extract_strided_slice %205 {offsets = [6, 0], sizes = [1, 256], strides = [1, 1]} : vector<8x256xf32> to vector<1x256xf32>
    %245 = vector.broadcast %243 : vector<4x1xf32> to vector<4x256xf32>
    %246 = vector.broadcast %244 : vector<1x256xf32> to vector<4x256xf32>
    %247 = arith.mulf %245, %246 : vector<4x256xf32>
    %248 = arith.addf %242, %247 : vector<4x256xf32>
    %249 = vector.extract_strided_slice %14 {offsets = [0, 7], sizes = [4, 1], strides = [1, 1]} : vector<4x8xf32> to vector<4x1xf32>
    %250 = vector.extract_strided_slice %205 {offsets = [7, 0], sizes = [1, 256], strides = [1, 1]} : vector<8x256xf32> to vector<1x256xf32>
    %251 = vector.broadcast %249 : vector<4x1xf32> to vector<4x256xf32>
    %252 = vector.broadcast %250 : vector<1x256xf32> to vector<4x256xf32>
    %253 = arith.mulf %251, %252 : vector<4x256xf32>
    %254 = arith.addf %248, %253 : vector<4x256xf32>
    %c0_35 = arith.constant 0 : index
    %c0_36 = arith.constant 0 : index
    %255 = vector.load %arg4[%c0_35, %c0_36] : memref<4x256xf32, #tpu.memory_space<vmem>>, vector<4x256xf32>
    tpu.vector_store %arg4[%c0_35, %c0_36], %254 {strides = array<i32>} : memref<4x256xf32, #tpu.memory_space<vmem>>, vector<4x256xf32>,
    return
  }
  func.func @transform_0(%arg0: i32) -> (i32, i32) {
    %c0_i32 = arith.constant 0 : i32
    %c0_i32_0 = arith.constant 0 : i32
    %c0_i32_1 = arith.constant 0 : i32
    return %c0_i32, %c0_i32_0 : i32, i32
  }
  func.func @transform_1(%arg0: i32) -> (i32, i32) {
    %c0_i32 = arith.constant 0 : i32
    %c0_i32_0 = arith.constant 0 : i32
    %c0_i32_1 = arith.constant 0 : i32
    return %c0_i32, %c0_i32_0 : i32, i32
  }
  func.func @transform_2(%arg0: i32) -> (i32, i32) {
    %c0_i32 = arith.constant 0 : i32
    %c0_i32_0 = arith.constant 0 : i32
    %c0_i32_1 = arith.constant 0 : i32
    return %c0_i32, %c0_i32_0 : i32, i32
  }
  func.func @transform_3(%arg0: i32) -> (i32, i32) {
    %c0_i32 = arith.constant 0 : i32
    %c0_i32_0 = arith.constant 0 : i32
    %c0_i32_1 = arith.constant 0 : i32
    return %c0_i32, %c0_i32_0 : i32, i32
  }
}

</mosaic_0001>

<llo_original>
// kernel: tpu_custom_call.1
$region0: #{tpu_custom_call.1}
  #allocation0 [shape = 'u32[]', space=smem, size = 0x4, offset = 0x4, fixed_abs, tag = 'smem constant byte address 0x4 - core index']
  #allocation1 [shape = 'u32[72,128]{1,0:T(1,128)}', space=vmem, size = 0x9000, scoped, tag = 'internal scratch']
  %s0 = inlined_call_operand.vmem [shape: f32[2,256], index: 0, kind: input, shape index: {}]
  %s1 = inlined_call_operand.vmem [shape: f32[8,10], index: 1, kind: input, shape index: {}]
  %s2 = inlined_call_operand.vmem [shape: f32[28,8], index: 2, kind: input, shape index: {}]
  %s3 = inlined_call_operand.hbm [shape: f32[4,256], index: 3, kind: output, shape index: {}]
  %s4 = sld [smem:[#allocation0]]
  $region22: #{tpu_custom_call.1} parent=0
    _
  %s6 = ssub.s32 1, %s4
  %s7 = scalar_select 0, %s6, %s4
  $region1: #{tpu_custom_call.1} parent=0
    #allocation2 [shape = 'u8[4096]{0}', space=vmem, size = 0x1000, scoped, tag = 'output window, operand 0, single buffered']
    #allocation3 [shape = 's32[1]{0}', space=sflag, size = 0x4, scoped, tag = 'scoped memory for tpu_custom_call.1']
    %8 = vsyncpa [#allocation3], 0
    // Predicated region
    $region2: #{tpu_custom_call.1} parent=1 // pred_check
      _
    $region3: #{tpu_custom_call.1} parent=1 // pred_check_branch
      %10 = sbr.rel (0) target = $region5
    $region4: #{tpu_custom_call.1} parent=1 // pred_region
      _
    $region5: #{tpu_custom_call.1} parent=1 // pred_fallthru
      _
    // Predicated region
    $region6: #{tpu_custom_call.1} parent=1 // pred_check
      _
    $region7: #{tpu_custom_call.1} parent=1 // pred_check_branch
      %12 = sbr.rel (0) target = $region9
    $region8: #{tpu_custom_call.1} parent=1 // pred_region
      _
    $region9: #{tpu_custom_call.1} parent=1 // pred_fallthru
      _
    // Predicated region
    $region10: #{tpu_custom_call.1} parent=1 // pred_check
      _
    $region11: #{tpu_custom_call.1} parent=1 // pred_check_branch
      %14 = sbr.rel (0) target = $region13
    $region12: #{tpu_custom_call.1} parent=1 // pred_region
      _
    $region13: #{tpu_custom_call.1} parent=1 // pred_fallthru
      _
    %v15 = vld [vmem:[%s0] sm:$0xf]
    %v16 = vld [vmem:[%s1] sm:$0xff]
    %v17 = vld [vmem:[%s1] sm:$0xf]
    %v18 = vld [vmem:[%s2] sm:$0xff]
    %v19 = vld [vmem:[%s2 + $0x8] sm:$0xff]
    %v20 = vld [vmem:[%s2 + $0x10] sm:$0xff]
    %v21 = vld [vmem:[%s2 + $0x18] sm:$0xf]
    %23 = vset.pattern.permute.xlu0 0
    %24 = vperm.xlu0 %23, %v18
    %v25 = vpop.permute.xlu0 %24
    %v28 = vperm.slane %v15, 0
    %v29 = vperm.slane %v15, 2
    %v32 = vperm.slane %v28, 0
    %v33 = vperm.slane %v29, 0
    %v34 = vmul.f32 %v25, %v32
    %v35 = vmul.f32 %v25, %v33
    %37 = vset.pattern.permute.xlu0 0
    %38 = vperm.xlu0 %37, %v16
    %v39 = vpop.permute.xlu0 %38
    %v41 = vadd.f32 %v34, %v39
    %v42 = vadd.f32 %v35, %v39
    %43 = vset.pattern.permute.xlu0 1
    %44 = vperm.xlu0 %43, %v18
    %v45 = vpop.permute.xlu0 %44
    %v47 = vperm.slane %v15, 1
    %v48 = vperm.slane %v15, 3
    %v51 = vperm.slane %v47, 1
    %v52 = vperm.slane %v48, 1
    %v53 = vmul.f32 %v45, %v51
    %v54 = vmul.f32 %v45, %v52
    %v55 = vadd.f32 %v41, %v53
    %v56 = vadd.f32 %v42, %v54
    %v57 = vrot.slane %v55, 4
    %v58 = vadd.f32 %v55, %v57
    %v59 = vrot.slane %v58, 2
    %v60 = vadd.f32 %v58, %v59
    %v61 = vrot.slane %v60, 1
    %v62 = vadd.f32 %v60, %v61
    %v63 = vrot.slane %v56, 4
    %v64 = vadd.f32 %v56, %v63
    %v65 = vrot.slane %v64, 2
    %v66 = vadd.f32 %v64, %v65
    %v67 = vrot.slane %v66, 1
    %v68 = vadd.f32 %v66, %v67
    %v69 = vrcp.pop 8.0
    %v70 = vmul.f32 8.0, %v69
    %v71 = vsub.f32 1.0, %v70
    %v72 = vmul.f32 %v69, %v71
    %v73 = vadd.f32 %v69, %v72
    %vm74 = vweird.f32 %v69
    %v75 = vsel %vm74, %v69, %v73
    %v76 = vmul.f32 %v62, %v75
    %v77 = vmul.f32 %v68, %v75
    %v78 = vsub.f32 %v55, %v76
    %v79 = vsub.f32 %v56, %v77
    %v80 = vmul.f32 %v78, %v78
    %v81 = vmul.f32 %v79, %v79
    %v82 = vrot.slane %v80, 4
    %v83 = vadd.f32 %v80, %v82
    %v84 = vrot.slane %v83, 2
    %v85 = vadd.f32 %v83, %v84
    %v86 = vrot.slane %v85, 1
    %v87 = vadd.f32 %v85, %v86
    %v88 = vrot.slane %v81, 4
    %v89 = vadd.f32 %v81, %v88
    %v90 = vrot.slane %v89, 2
    %v91 = vadd.f32 %v89, %v90
    %v92 = vrot.slane %v91, 1
    %v93 = vadd.f32 %v91, %v92
    %v94 = vmul.f32 %v87, %v75
    %v95 = vmul.f32 %v93, %v75
    %v96 = vadd.f32 %v94, 1e-05
    %v97 = vadd.f32 %v95, 1e-05
    %v98 = vrsqrt.pop %v96
    %v99 = vmul.f32 %v98, %v96
    %v100 = vmul.f32 %v99, %v98
    %v101 = vmul.f32 0.5, %v100
    %v102 = vsub.f32 1.5, %v101
    %v103 = vmul.f32 %v98, %v102
    %vm104 = vweird.f32 %v96
    %vm105 = vweird.f32 %v98
    %vm106 = vmor %vm104, %vm105
    %v107 = vsel %vm106, %v98, %v103
    %v108 = vrsqrt.pop %v97
    %v109 = vmul.f32 %v108, %v97
    %v110 = vmul.f32 %v109, %v108
    %v111 = vmul.f32 0.5, %v110
    %v112 = vsub.f32 1.5, %v111
    %v113 = vmul.f32 %v108, %v112
    %vm114 = vweird.f32 %v97
    %vm115 = vweird.f32 %v108
    %vm116 = vmor %vm114, %vm115
    %v117 = vsel %vm116, %v108, %v113
    %v118 = vmul.f32 %v78, %v107
    %v119 = vmul.f32 %v79, %v117
    %120 = vset.pattern.permute.xlu0 1
    %121 = vperm.xlu0 %120, %v16
    %v122 = vpop.permute.xlu0 %121
    %v124 = vmul.f32 %v118, %v122
    %v125 = vmul.f32 %v119, %v122
    %126 = vset.pattern.permute.xlu0 2
    %127 = vperm.xlu0 %126, %v16
    %v128 = vpop.permute.xlu0 %127
    %v130 = vadd.f32 %v124, %v128
    %v131 = vadd.f32 %v125, %v128
    %v132 = vmax.f32 %v130, 0.0
    %v133 = vmax.f32 %v131, 0.0
    %135 = vset.pattern.permute.xlu0 0
    %136 = vperm.xlu0 %135, %v19
    %v137 = vpop.permute.xlu0 %136
    %v139 = vperm.slane %v132, 0
    %v140 = vperm.slane %v133, 0
    %v141 = vmul.f32 %v137, %v139
    %v142 = vmul.f32 %v137, %v140
    %143 = vset.pattern.permute.xlu0 3
    %144 = vperm.xlu0 %143, %v16
    %v145 = vpop.permute.xlu0 %144
    %v147 = vadd.f32 %v141, %v145
    %v148 = vadd.f32 %v142, %v145
    %149 = vset.pattern.permute.xlu0 1
    %150 = vperm.xlu0 %149, %v19
    %v151 = vpop.permute.xlu0 %150
    %v153 = vperm.slane %v132, 1
    %v154 = vperm.slane %v133, 1
    %v155 = vmul.f32 %v151, %v153
    %v156 = vmul.f32 %v151, %v154
    %v157 = vadd.f32 %v147, %v155
    %v158 = vadd.f32 %v148, %v156
    %159 = vset.pattern.permute.xlu0 2
    %160 = vperm.xlu0 %159, %v19
    %v161 = vpop.permute.xlu0 %160
    %v163 = vperm.slane %v132, 2
    %v164 = vperm.slane %v133, 2
    %v165 = vmul.f32 %v161, %v163
    %v166 = vmul.f32 %v161, %v164
    %v167 = vadd.f32 %v157, %v165
    %v168 = vadd.f32 %v158, %v166
    %169 = vset.pattern.permute.xlu0 3
    %170 = vperm.xlu0 %169, %v19
    %v171 = vpop.permute.xlu0 %170
    %v173 = vperm.slane %v132, 3
    %v174 = vperm.slane %v133, 3
    %v175 = vmul.f32 %v171, %v173
    %v176 = vmul.f32 %v171, %v174
    %v177 = vadd.f32 %v167, %v175
    %v178 = vadd.f32 %v168, %v176
    %179 = vset.pattern.permute.xlu0 4
    %180 = vperm.xlu0 %179, %v19
    %v181 = vpop.permute.xlu0 %180
    %v183 = vperm.slane %v132, 4
    %v184 = vperm.slane %v133, 4
    %v185 = vmul.f32 %v181, %v183
    %v186 = vmul.f32 %v181, %v184
    %v187 = vadd.f32 %v177, %v185
    %v188 = vadd.f32 %v178, %v186
    %189 = vset.pattern.permute.xlu0 5
    %190 = vperm.xlu0 %189, %v19
    %v191 = vpop.permute.xlu0 %190
    %v193 = vperm.slane %v132, 5
    %v194 = vperm.slane %v133, 5
    %v195 = vmul.f32 %v191, %v193
    %v196 = vmul.f32 %v191, %v194
    %v197 = vadd.f32 %v187, %v195
    %v198 = vadd.f32 %v188, %v196
    %199 = vset.pattern.permute.xlu0 6
    %200 = vperm.xlu0 %199, %v19
    %v201 = vpop.permute.xlu0 %200
    %v203 = vperm.slane %v132, 6
    %v204 = vperm.slane %v133, 6
    %v205 = vmul.f32 %v201, %v203
    %v206 = vmul.f32 %v201, %v204
    %v207 = vadd.f32 %v197, %v205
    %v208 = vadd.f32 %v198, %v206
    %209 = vset.pattern.permute.xlu0 7
    %210 = vperm.xlu0 %209, %v19
    %v211 = vpop.permute.xlu0 %210
    %v213 = vperm.slane %v132, 7
    %v214 = vperm.slane %v133, 7
    %v215 = vmul.f32 %v211, %v213
    %v216 = vmul.f32 %v211, %v214
    %v217 = vadd.f32 %v207, %v215
    %v218 = vadd.f32 %v208, %v216
    %v219 = vadd.f32 %v55, %v217
    %v220 = vadd.f32 %v56, %v218
    %v221 = vrot.slane %v219, 4
    %v222 = vadd.f32 %v219, %v221
    %v223 = vrot.slane %v222, 2
    %v224 = vadd.f32 %v222, %v223
    %v225 = vrot.slane %v224, 1
    %v226 = vadd.f32 %v224, %v225
    %v227 = vrot.slane %v220, 4
    %v228 = vadd.f32 %v220, %v227
    %v229 = vrot.slane %v228, 2
    %v230 = vadd.f32 %v228, %v229
    %v231 = vrot.slane %v230, 1
    %v232 = vadd.f32 %v230, %v231
    %v233 = vmul.f32 %v226, %v75
    %v234 = vmul.f32 %v232, %v75
    %v235 = vsub.f32 %v219, %v233
    %v236 = vsub.f32 %v220, %v234
    %v237 = vmul.f32 %v235, %v235
    %v238 = vmul.f32 %v236, %v236
    %v239 = vrot.slane %v237, 4
    %v240 = vadd.f32 %v237, %v239
    %v241 = vrot.slane %v240, 2
    %v242 = vadd.f32 %v240, %v241
    %v243 = vrot.slane %v242, 1
    %v244 = vadd.f32 %v242, %v243
    %v245 = vrot.slane %v238, 4
    %v246 = vadd.f32 %v238, %v245
    %v247 = vrot.slane %v246, 2
    %v248 = vadd.f32 %v246, %v247
    %v249 = vrot.slane %v248, 1
    %v250 = vadd.f32 %v248, %v249
    %v251 = vmul.f32 %v244, %v75
    %v252 = vmul.f32 %v250, %v75
    %v253 = vadd.f32 %v251, 1e-05
    %v254 = vadd.f32 %v252, 1e-05
    %v255 = vrsqrt.pop %v253
    %v256 = vmul.f32 %v255, %v253
    %v257 = vmul.f32 %v256, %v255
    %v258 = vmul.f32 0.5, %v257
    %v259 = vsub.f32 1.5, %v258
    %v260 = vmul.f32 %v255, %v259
    %vm261 = vweird.f32 %v253
    %vm262 = vweird.f32 %v255
    %vm263 = vmor %vm261, %vm262
    %v264 = vsel %vm263, %v255, %v260
    %v265 = vrsqrt.pop %v254
    %v266 = vmul.f32 %v265, %v254
    %v267 = vmul.f32 %v266, %v265
    %v268 = vmul.f32 0.5, %v267
    %v269 = vsub.f32 1.5, %v268
    %v270 = vmul.f32 %v265, %v269
    %vm271 = vweird.f32 %v254
    %vm272 = vweird.f32 %v265
    %vm273 = vmor %vm271, %vm272
    %v274 = vsel %vm273, %v265, %v270
    %v275 = vmul.f32 %v235, %v264
    %v276 = vmul.f32 %v236, %v274
    %277 = vset.pattern.permute.xlu0 4
    %278 = vperm.xlu0 %277, %v16
    %v279 = vpop.permute.xlu0 %278
    %v281 = vmul.f32 %v275, %v279
    %v282 = vmul.f32 %v276, %v279
    %283 = vset.pattern.permute.xlu0 5
    %284 = vperm.xlu0 %283, %v16
    %v285 = vpop.permute.xlu0 %284
    %v287 = vadd.f32 %v281, %v285
    %v288 = vadd.f32 %v282, %v285
    %v289 = vmax.f32 %v287, 0.0
    %v290 = vmax.f32 %v288, 0.0
    %292 = vset.pattern.permute.xlu0 0
    %293 = vperm.xlu0 %292, %v20
    %v294 = vpop.permute.xlu0 %293
    %v296 = vperm.slane %v289, 0
    %v297 = vperm.slane %v290, 0
    %v298 = vmul.f32 %v294, %v296
    %v299 = vmul.f32 %v294, %v297
    %300 = vset.pattern.permute.xlu0 6
    %301 = vperm.xlu0 %300, %v16
    %v302 = vpop.permute.xlu0 %301
    %v304 = vadd.f32 %v298, %v302
    %v305 = vadd.f32 %v299, %v302
    %306 = vset.pattern.permute.xlu0 1
    %307 = vperm.xlu0 %306, %v20
    %v308 = vpop.permute.xlu0 %307
    %v310 = vperm.slane %v289, 1
    %v311 = vperm.slane %v290, 1
    %v312 = vmul.f32 %v308, %v310
    %v313 = vmul.f32 %v308, %v311
    %v314 = vadd.f32 %v304, %v312
    %v315 = vadd.f32 %v305, %v313
    %316 = vset.pattern.permute.xlu0 2
    %317 = vperm.xlu0 %316, %v20
    %v318 = vpop.permute.xlu0 %317
    %v320 = vperm.slane %v289, 2
    %v321 = vperm.slane %v290, 2
    %v322 = vmul.f32 %v318, %v320
    %v323 = vmul.f32 %v318, %v321
    %v324 = vadd.f32 %v314, %v322
    %v325 = vadd.f32 %v315, %v323
    %326 = vset.pattern.permute.xlu0 3
    %327 = vperm.xlu0 %326, %v20
    %v328 = vpop.permute.xlu0 %327
    %v330 = vperm.slane %v289, 3
    %v331 = vperm.slane %v290, 3
    %v332 = vmul.f32 %v328, %v330
    %v333 = vmul.f32 %v328, %v331
    %v334 = vadd.f32 %v324, %v332
    %v335 = vadd.f32 %v325, %v333
    %336 = vset.pattern.permute.xlu0 4
    %337 = vperm.xlu0 %336, %v20
    %v338 = vpop.permute.xlu0 %337
    %v340 = vperm.slane %v289, 4
    %v341 = vperm.slane %v290, 4
    %v342 = vmul.f32 %v338, %v340
    %v343 = vmul.f32 %v338, %v341
    %v344 = vadd.f32 %v334, %v342
    %v345 = vadd.f32 %v335, %v343
    %346 = vset.pattern.permute.xlu0 5
    %347 = vperm.xlu0 %346, %v20
    %v348 = vpop.permute.xlu0 %347
    %v350 = vperm.slane %v289, 5
    %v351 = vperm.slane %v290, 5
    %v352 = vmul.f32 %v348, %v350
    %v353 = vmul.f32 %v348, %v351
    %v354 = vadd.f32 %v344, %v352
    %v355 = vadd.f32 %v345, %v353
    %356 = vset.pattern.permute.xlu0 6
    %357 = vperm.xlu0 %356, %v20
    %v358 = vpop.permute.xlu0 %357
    %v360 = vperm.slane %v289, 6
    %v361 = vperm.slane %v290, 6
    %v362 = vmul.f32 %v358, %v360
    %v363 = vmul.f32 %v358, %v361
    %v364 = vadd.f32 %v354, %v362
    %v365 = vadd.f32 %v355, %v363
    %366 = vset.pattern.permute.xlu0 7
    %367 = vperm.xlu0 %366, %v20
    %v368 = vpop.permute.xlu0 %367
    %v370 = vperm.slane %v289, 7
    %v371 = vperm.slane %v290, 7
    %v372 = vmul.f32 %v368, %v370
    %v373 = vmul.f32 %v368, %v371
    %v374 = vadd.f32 %v364, %v372
    %v375 = vadd.f32 %v365, %v373
    %v376 = vadd.f32 %v219, %v374
    %v377 = vadd.f32 %v220, %v375
    %v378 = vrot.slane %v376, 4
    %v379 = vadd.f32 %v376, %v378
    %v380 = vrot.slane %v379, 2
    %v381 = vadd.f32 %v379, %v380
    %v382 = vrot.slane %v381, 1
    %v383 = vadd.f32 %v381, %v382
    %v384 = vrot.slane %v377, 4
    %v385 = vadd.f32 %v377, %v384
    %v386 = vrot.slane %v385, 2
    %v387 = vadd.f32 %v385, %v386
    %v388 = vrot.slane %v387, 1
    %v389 = vadd.f32 %v387, %v388
    %v390 = vmul.f32 %v383, %v75
    %v391 = vmul.f32 %v389, %v75
    %v392 = vsub.f32 %v376, %v390
    %v393 = vsub.f32 %v377, %v391
    %v394 = vmul.f32 %v392, %v392
    %v395 = vmul.f32 %v393, %v393
    %v396 = vrot.slane %v394, 4
    %v397 = vadd.f32 %v394, %v396
    %v398 = vrot.slane %v397, 2
    %v399 = vadd.f32 %v397, %v398
    %v400 = vrot.slane %v399, 1
    %v401 = vadd.f32 %v399, %v400
    %v402 = vrot.slane %v395, 4
    %v403 = vadd.f32 %v395, %v402
    %v404 = vrot.slane %v403, 2
    %v405 = vadd.f32 %v403, %v404
    %v406 = vrot.slane %v405, 1
    %v407 = vadd.f32 %v405, %v406
    %v408 = vmul.f32 %v401, %v75
    %v409 = vmul.f32 %v407, %v75
    %v410 = vadd.f32 %v408, 1e-05
    %v411 = vadd.f32 %v409, 1e-05
    %v412 = vrsqrt.pop %v410
    %v413 = vmul.f32 %v412, %v410
    %v414 = vmul.f32 %v413, %v412
    %v415 = vmul.f32 0.5, %v414
    %v416 = vsub.f32 1.5, %v415
    %v417 = vmul.f32 %v412, %v416
    %vm418 = vweird.f32 %v410
    %vm419 = vweird.f32 %v412
    %vm420 = vmor %vm418, %vm419
    %v421 = vsel %vm420, %v412, %v417
    %v422 = vrsqrt.pop %v411
    %v423 = vmul.f32 %v422, %v411
    %v424 = vmul.f32 %v423, %v422
    %v425 = vmul.f32 0.5, %v424
    %v426 = vsub.f32 1.5, %v425
    %v427 = vmul.f32 %v422, %v426
    %vm428 = vweird.f32 %v411
    %vm429 = vweird.f32 %v422
    %vm430 = vmor %vm428, %vm429
    %v431 = vsel %vm430, %v422, %v427
    %v432 = vmul.f32 %v392, %v421
    %v433 = vmul.f32 %v393, %v431
    %434 = vset.pattern.permute.xlu0 7
    %435 = vperm.xlu0 %434, %v16
    %v436 = vpop.permute.xlu0 %435
    %v438 = vmul.f32 %v432, %v436
    %v439 = vmul.f32 %v433, %v436
    %440 = vset.pattern.permute.xlu0 8
    %441 = vperm.xlu0 %440, %v16
    %v442 = vpop.permute.xlu0 %441
    %v444 = vadd.f32 %v438, %v442
    %v445 = vadd.f32 %v439, %v442
    %v446 = vmax.f32 %v444, 0.0
    %v447 = vmax.f32 %v445, 0.0
    %449 = vset.pattern.permute.xlu0 0
    %450 = vperm.xlu0 %449, %v21
    %v451 = vpop.permute.xlu0 %450
    %v453 = vperm.slane %v446, 0
    %v454 = vperm.slane %v447, 0
    %v455 = vmul.f32 %v451, %v453
    %v456 = vmul.f32 %v451, %v454
    %458 = vset.pattern.permute.xlu0 9
    %459 = vperm.xlu0 %458, %v17
    %v460 = vpop.permute.xlu0 %459
    %v462 = vadd.f32 %v455, %v460
    %v463 = vadd.f32 %v456, %v460
    %464 = vset.pattern.permute.xlu0 1
    %465 = vperm.xlu0 %464, %v21
    %v466 = vpop.permute.xlu0 %465
    %v468 = vperm.slane %v446, 1
    %v469 = vperm.slane %v447, 1
    %v470 = vmul.f32 %v466, %v468
    %v471 = vmul.f32 %v466, %v469
    %v472 = vadd.f32 %v462, %v470
    %v473 = vadd.f32 %v463, %v471
    %474 = vset.pattern.permute.xlu0 2
    %475 = vperm.xlu0 %474, %v21
    %v476 = vpop.permute.xlu0 %475
    %v478 = vperm.slane %v446, 2
    %v479 = vperm.slane %v447, 2
    %v480 = vmul.f32 %v476, %v478
    %v481 = vmul.f32 %v476, %v479
    %v482 = vadd.f32 %v472, %v480
    %v483 = vadd.f32 %v473, %v481
    %484 = vset.pattern.permute.xlu0 3
    %485 = vperm.xlu0 %484, %v21
    %v486 = vpop.permute.xlu0 %485
    %v488 = vperm.slane %v446, 3
    %v489 = vperm.slane %v447, 3
    %v490 = vmul.f32 %v486, %v488
    %v491 = vmul.f32 %v486, %v489
    %v492 = vadd.f32 %v482, %v490
    %v493 = vadd.f32 %v483, %v491
    %494 = vset.pattern.permute.xlu0 4
    %495 = vperm.xlu0 %494, %v21
    %v496 = vpop.permute.xlu0 %495
    %v498 = vperm.slane %v446, 4
    %v499 = vperm.slane %v447, 4
    %v500 = vmul.f32 %v496, %v498
    %v501 = vmul.f32 %v496, %v499
    %v502 = vadd.f32 %v492, %v500
    %v503 = vadd.f32 %v493, %v501
    %504 = vset.pattern.permute.xlu0 5
    %505 = vperm.xlu0 %504, %v21
    %v506 = vpop.permute.xlu0 %505
    %v508 = vperm.slane %v446, 5
    %v509 = vperm.slane %v447, 5
    %v510 = vmul.f32 %v506, %v508
    %v511 = vmul.f32 %v506, %v509
    %v512 = vadd.f32 %v502, %v510
    %v513 = vadd.f32 %v503, %v511
    %514 = vset.pattern.permute.xlu0 6
    %515 = vperm.xlu0 %514, %v21
    %v516 = vpop.permute.xlu0 %515
    %v518 = vperm.slane %v446, 6
    %v519 = vperm.slane %v447, 6
    %v520 = vmul.f32 %v516, %v518
    %v521 = vmul.f32 %v516, %v519
    %v522 = vadd.f32 %v512, %v520
    %v523 = vadd.f32 %v513, %v521
    %524 = vset.pattern.permute.xlu0 7
    %525 = vperm.xlu0 %524, %v21
    %v526 = vpop.permute.xlu0 %525
    %v528 = vperm.slane %v446, 7
    %v529 = vperm.slane %v447, 7
    %v530 = vmul.f32 %v526, %v528
    %v531 = vmul.f32 %v526, %v529
    %v532 = vadd.f32 %v522, %v530
    %v533 = vadd.f32 %v523, %v531
    %v536 = vrot.slane %v533, 4
    %vm537 = vcmask 1043456
    %v538 = vsel %vm537, %v532, %v536
    %540 = vst [vmem:[#allocation2] sm:$0xff] %v538
    // Predicated region
    $region14: #{tpu_custom_call.1} parent=1 // pred_check
      _
    $region15: #{tpu_custom_call.1} parent=1 // pred_check_branch
      %542 = sbr.rel (0) target = $region17
    $region16: #{tpu_custom_call.1} parent=1 // pred_region
      %544 = vsyncadd [#allocation3], 0
      %s546 = sshll.u32 [#allocation2], 4
      %s547 = int_to_ptr.vmem [resolvable:$true] %s546
      %s548 = sshll.u32 %s3, 4
      %s549 = int_to_ptr.hbm [resolvable:$true] %s548
      %551 = dma.vmem_to_hbm [thread:$0]  %s547, 128, %s549, [#allocation3]
    $region17: #{tpu_custom_call.1} parent=1 // pred_fallthru
      _
    // Predicated region
    $region18: #{tpu_custom_call.1} parent=1 // pred_check
      _
    $region19: #{tpu_custom_call.1} parent=1 // pred_check_branch
      %553 = sbr.rel (0) target = $region21
    $region20: #{tpu_custom_call.1} parent=1 // pred_region
      %555 = dma.done [#allocation3], 128
    $region21: #{tpu_custom_call.1} parent=1 // pred_fallthru
      _
    %556 = vsyncpa [#allocation3], 1

</llo_original>
